<compile_context>
chip_gen: v6e
topology: v6e:2x2x1
jax: 0.10.0
libtpu: 0.0.40
codegen_flags: <defaults>
</compile_context>

<pallas_src>
import functools

import jax
import jax.numpy as jnp
import numpy as np
from jax.experimental import pallas as pl
from jax.experimental.pallas import tpu as pltpu


def _afm_kernel(x16_ref, x32_ref, w1a_ref, w1b_ref, s1_ref, b1_ref,
                w2_ref, s2_ref, b2_ref, o_ref, acc_ref, *, inv_hw):
    """relu(bn1(W1 @ x)) -> spatial mean -> sigmoid(bn2(W2 @ pooled))."""
    t = pl.program_id(1)

    @pl.when(t == 0)
    def _():
        acc_ref[...] = jnp.zeros_like(acc_ref)

    x16 = x16_ref[0]                                    # (c16, tile)  lanes = spatial
    x32 = x32_ref[0]                                    # (c32, tile)
    # 1x1 conv with the channel-concat fused: W1 = [W1a | W1b].
    y = jnp.dot(w1a_ref[...], x16, preferred_element_type=jnp.float32)
    y += jnp.dot(w1b_ref[...], x32, preferred_element_type=jnp.float32)
    y = jnp.maximum(y * s1_ref[...] + b1_ref[...], 0.0)   # BN1 (folded) + ReLU, (oc, tile)
    acc_ref[...] += jnp.sum(y, axis=-1, keepdims=True)    # running spatial sum, (oc, 1)

    @pl.when(t == pl.num_programs(1) - 1)
    def _():
        pooled = acc_ref[...] * inv_hw                                 # global avg pool (oc, 1)
        z = jnp.dot(w2_ref[...], pooled, preferred_element_type=jnp.float32)  # conv_atten
        z = z * s2_ref[...] + b2_ref[...]                              # BN2 (folded)
        z = jax.nn.sigmoid(z)                                          # sigmoid_atten
        o_ref[...] = z.reshape(o_ref.shape).astype(o_ref.dtype)


def _choose_tile(hw, max_tile=1024):
    """Largest spatial (lane) tile: multiple of 128 dividing hw, capped at max_tile."""
    if hw <= max_tile:
        return hw                      # block == full dim, always legal
    t = (max_tile // 128) * 128
    while t >= 128:
        if hw % t == 0:
            return t
        t -= 128
    # TODO(synk): no 128-multiple divisor <= max_tile; fall back to one block
    # covering the full spatial extent (correct, just uses more VMEM).
    return hw


def attention_fusion_forward(feat16, feat32, params, *,
                             compute_dtype=jnp.bfloat16, max_tile=1024):
    """Matches AttentionFusionModule.forward (eval mode).

    feat16: (N, c16, H, W), feat32: (N, c32, h, w), NCHW. Returns (N, oc, 1, 1) f32.
    """
    N, c16, H, W = feat16.shape
    _, c32, h, w = feat32.shape
    HW = H * W

    # F.interpolate(feat32, (H, W), mode='nearest'): src = floor(dst * in / out).
    if H % h == 0 and W % w == 0:
        kh, kw = H // h, W // w
        feat32_up = jnp.broadcast_to(
            feat32[:, :, :, None, :, None], (N, c32, h, kh, w, kw)
        ).reshape(N, c32, H, W)
    else:
        hi = (jnp.arange(H) * h) // H
        wi = (jnp.arange(W) * w) // W
        feat32_up = feat32[:, :, hi][:, :, :, wi]

    # NCHW -> (N, C, H*W): pure reshape, no transpose and no concat copy.
    x16 = feat16.reshape(N, c16, HW).astype(compute_dtype)
    x32 = feat32_up.reshape(N, c32, HW).astype(compute_dtype)

    (w1, g1, b1, m1, v1, w2, g2, b2, m2, v2) = params
    eps = 1e-5
    oc = w1.shape[0]

    # Fold eval-mode BN into per-channel scale / bias (convs have no bias).
    s1_vec = g1 / jnp.sqrt(v1 + eps)
    s2_vec = g2 / jnp.sqrt(v2 + eps)
    s1 = s1_vec.reshape(oc, 1).astype(jnp.float32)
    bias1 = (b1 - m1 * s1_vec).reshape(oc, 1).astype(jnp.float32)
    s2 = s2_vec.reshape(oc, 1).astype(jnp.float32)
    bias2 = (b2 - m2 * s2_vec).reshape(oc, 1).astype(jnp.float32)

    w1_2d = w1.reshape(oc, c16 + c32)
    w1a = w1_2d[:, :c16].astype(compute_dtype)         # (oc, c16)
    w1b = w1_2d[:, c16:].astype(compute_dtype)         # (oc, c32)
    w2_2d = w2.reshape(oc, oc).astype(jnp.float32)     # tiny, keep f32

    tile = _choose_tile(HW, max_tile)
    T = HW // tile

    out = pl.pallas_call(
        functools.partial(_afm_kernel, inv_hw=1.0 / HW),
        out_shape=jax.ShapeDtypeStruct((N, oc, 1), jnp.float32),
        grid_spec=pltpu.PrefetchScalarGridSpec(
            num_scalar_prefetch=0,
            grid=(N, T),
            in_specs=[
                pl.BlockSpec((1, c16, tile), lambda n, t: (n, 0, t)),
                pl.BlockSpec((1, c32, tile), lambda n, t: (n, 0, t)),
                pl.BlockSpec((oc, c16), lambda n, t: (0, 0)),
                pl.BlockSpec((oc, c32), lambda n, t: (0, 0)),
                pl.BlockSpec((oc, 1), lambda n, t: (0, 0)),
                pl.BlockSpec((oc, 1), lambda n, t: (0, 0)),
                pl.BlockSpec((oc, oc), lambda n, t: (0, 0)),
                pl.BlockSpec((oc, 1), lambda n, t: (0, 0)),
                pl.BlockSpec((oc, 1), lambda n, t: (0, 0)),
            ],
            out_specs=pl.BlockSpec((1, oc, 1), lambda n, t: (n, 0, 0)),
            scratch_shapes=[pltpu.VMEM((oc, 1), jnp.float32)],
        ),
        compiler_params=pltpu.CompilerParams(
            dimension_semantics=("parallel", "arbitrary")),
    )(x16, x32, w1a, w1b, s1, bias1, w2_2d, s2, bias2)

    return out.reshape(N, oc, 1, 1)


def _reference(feat16, feat32, params):
    """Pure-JAX (NCHW) reference mirroring the PyTorch forward in eval mode."""
    (w1, g1, b1, m1, v1, w2, g2, b2, m2, v2) = params
    eps = 1e-5
    N, c16, H, W = feat16.shape
    _, c32, h, w = feat32.shape
    oc = w1.shape[0]
    Cin = c16 + c32

    hi = (jnp.arange(H) * h) // H
    wi = (jnp.arange(W) * w) // W
    feat32_up = feat32[:, :, hi][:, :, :, wi]
    fcat = jnp.concatenate([feat16, feat32_up], axis=1)

    feat = jnp.einsum('nchw,oc->nohw', fcat, w1.reshape(oc, Cin))
    feat = (feat - m1[None, :, None, None]) / jnp.sqrt(v1[None, :, None, None] + eps)
    feat = feat * g1[None, :, None, None] + b1[None, :, None, None]
    feat = jnp.maximum(feat, 0.0)

    pooled = jnp.mean(feat, axis=(2, 3))                              # (N, oc)
    atten = jnp.einsum('no,po->np', pooled, w2.reshape(oc, oc))
    atten = (atten - m2[None, :]) / jnp.sqrt(v2[None, :] + eps)
    atten = atten * g2[None, :] + b2[None, :]
    atten = jax.nn.sigmoid(atten)
    return atten.reshape(N, oc, 1, 1)


if __name__ == "__main__":
    key = jax.random.PRNGKey(0)
    k_f16, k_f32, k_w1, k_w2 = jax.random.split(key, 4)

    # Small shapes: feat16 (N, 3, 16, 16), feat32 (N, 5, 8, 8) -> in_chan=8, out_chan=8
    N, c16, c32 = 2, 3, 5
    H = W = 16
    in_chan = c16 + c32
    out_chan = 8

    feat16 = jax.random.normal(k_f16, (N, c16, H, W), dtype=jnp.float32)
    feat32 = jax.random.normal(k_f32, (N, c32, H // 2, W // 2), dtype=jnp.float32)

    # Deterministic parameter init (kaiming_normal_ with a=1 => std = 1/sqrt(fan_in))
    w1 = jax.random.normal(k_w1, (out_chan, in_chan, 1, 1), dtype=jnp.float32) / jnp.sqrt(in_chan)
    w2 = jax.random.normal(k_w2, (out_chan, out_chan, 1, 1), dtype=jnp.float32) / jnp.sqrt(out_chan)
    # BatchNorm affine params and running stats (nontrivial, deterministic).
    g1 = 1.0 + 0.05 * jnp.arange(out_chan, dtype=jnp.float32)
    b1 = 0.01 * jnp.arange(out_chan, dtype=jnp.float32)
    m1 = 0.02 * jnp.arange(out_chan, dtype=jnp.float32)
    v1 = 1.0 + 0.10 * jnp.arange(out_chan, dtype=jnp.float32)
    g2 = 1.0 - 0.03 * jnp.arange(out_chan, dtype=jnp.float32)
    b2 = -0.02 * jnp.arange(out_chan, dtype=jnp.float32)
    m2 = 0.01 * jnp.arange(out_chan, dtype=jnp.float32)
    v2 = 1.0 + 0.05 * jnp.arange(out_chan, dtype=jnp.float32)

    params = (w1, g1, b1, m1, v1, w2, g2, b2, m2, v2)

    ref = jax.block_until_ready(_reference(feat16, feat32, params))

    # f32 path: tight correctness check against the f32 reference.
    out_f32 = jax.block_until_ready(
        attention_fusion_forward(feat16, feat32, params,
                                 compute_dtype=jnp.float32))
    np.testing.assert_allclose(np.asarray(out_f32), np.asarray(ref),
                               rtol=1e-5, atol=1e-5)

    # bf16 activations/W1 (default, halves HBM traffic): loose check
    # (output is a sigmoid in (0, 1), so absolute tolerance is meaningful).
    out_bf16 = jax.block_until_ready(
        attention_fusion_forward(feat16, feat32, params))
    np.testing.assert_allclose(np.asarray(out_bf16), np.asarray(ref),
                               rtol=0.0, atol=2e-2)

    print("KERNEL_OK")
</pallas_src>

<mosaic_0001>
module attributes {stable_mosaic.version = 11 : i64} {
  func.func @_afm_kernel(%arg0: i32, %arg1: i32, %arg2: memref<1x3x256xf32, #tpu.memory_space<vmem>>, %arg3: memref<1x5x256xf32, #tpu.memory_space<vmem>>, %arg4: memref<8x3xf32, #tpu.memory_space<vmem>>, %arg5: memref<8x5xf32, #tpu.memory_space<vmem>>, %arg6: memref<8x1xf32, #tpu.memory_space<vmem>>, %arg7: memref<8x1xf32, #tpu.memory_space<vmem>>, %arg8: memref<8x8xf32, #tpu.memory_space<vmem>>, %arg9: memref<8x1xf32, #tpu.memory_space<vmem>>, %arg10: memref<8x1xf32, #tpu.memory_space<vmem>>, %arg11: memref<1x8x1xf32, #tpu.memory_space<vmem>>, %arg12: memref<8x1xf32, #tpu.memory_space<vmem>>) attributes {dimension_semantics = [#tpu.dimension_semantics<parallel>, #tpu.dimension_semantics<arbitrary>], iteration_bounds = array<i64: 2, 1>, scalar_prefetch = 0 : i64, scratch_operands = 1 : i64, tpu.core_type = #tpu.core_type<tc>, window_params = [{transform_indices = @transform_0, window_bounds = array<i64: 1, 3, 256>}, {transform_indices = @transform_1, window_bounds = array<i64: 1, 5, 256>}, {pipeline_mode = #tpu.pipeline_mode<synchronous>, transform_indices = @transform_2, window_bounds = array<i64: 8, 3>}, {pipeline_mode = #tpu.pipeline_mode<synchronous>, transform_indices = @transform_3, window_bounds = array<i64: 8, 5>}, {pipeline_mode = #tpu.pipeline_mode<synchronous>, transform_indices = @transform_4, window_bounds = array<i64: 8, 1>}, {pipeline_mode = #tpu.pipeline_mode<synchronous>, transform_indices = @transform_5, window_bounds = array<i64: 8, 1>}, {pipeline_mode = #tpu.pipeline_mode<synchronous>, transform_indices = @transform_6, window_bounds = array<i64: 8, 8>}, {pipeline_mode = #tpu.pipeline_mode<synchronous>, transform_indices = @transform_7, window_bounds = array<i64: 8, 1>}, {pipeline_mode = #tpu.pipeline_mode<synchronous>, transform_indices = @transform_8, window_bounds = array<i64: 8, 1>}, {transform_indices = @transform_9, window_bounds = array<i64: 1, 8, 1>}]} {
    %c0_i32 = arith.constant 0 : i32
    %0 = arith.cmpi eq, %arg1, %c0_i32 : i32
    %1 = arith.extui %0 : i1 to i32
    %c0_i32_0 = arith.constant 0 : i32
    %2 = arith.cmpi ne, %1, %c0_i32_0 : i32
    scf.if %2 {
      %cst_23 = arith.constant 0.000000e+00 : f32
      %28 = vector.broadcast %cst_23 : f32 to vector<8x1xf32>
      %c0_24 = arith.constant 0 : index
      %c0_25 = arith.constant 0 : index
      %29 = vector.load %arg12[%c0_24, %c0_25] : memref<8x1xf32, #tpu.memory_space<vmem>>, vector<8x1xf32>
      tpu.vector_store %arg12[%c0_24, %c0_25], %28 {strides = array<i32>} : memref<8x1xf32, #tpu.memory_space<vmem>>, vector<8x1xf32>,
    } else {
    }
    %c0 = arith.constant 0 : index
    %c0_1 = arith.constant 0 : index
    %c0_2 = arith.constant 0 : index
    %3 = vector.load %arg2[%c0, %c0_1, %c0_2] : memref<1x3x256xf32, #tpu.memory_space<vmem>>, vector<1x3x256xf32>
    %4 = vector.shape_cast %3 : vector<1x3x256xf32> to vector<3x256xf32>
    %c0_3 = arith.constant 0 : index
    %c0_4 = arith.constant 0 : index
    %c0_5 = arith.constant 0 : index
    %5 = vector.load %arg3[%c0_3, %c0_4, %c0_5] : memref<1x5x256xf32, #tpu.memory_space<vmem>>, vector<1x5x256xf32>
    %6 = vector.shape_cast %5 : vector<1x5x256xf32> to vector<5x256xf32>
    %c0_6 = arith.constant 0 : index
    %c0_7 = arith.constant 0 : index
    %7 = vector.load %arg4[%c0_6, %c0_7] : memref<8x3xf32, #tpu.memory_space<vmem>>, vector<8x3xf32>
    %cst = arith.constant dense<0.000000e+00> : vector<8x256xf32>
    %8 = tpu.matmul %7, %4, %cst {dimension_numbers = #tpu.dot_dimension_numbers<[1], [0], [0], [1], [0, 0, 1, 1], [], []>} : vector<8x3xf32>, vector<3x256xf32>, vector<8x256xf32> -> vector<8x256xf32>
    %c0_8 = arith.constant 0 : index
    %c0_9 = arith.constant 0 : index
    %9 = vector.load %arg5[%c0_8, %c0_9] : memref<8x5xf32, #tpu.memory_space<vmem>>, vector<8x5xf32>
    %cst_10 = arith.constant dense<0.000000e+00> : vector<8x256xf32>
    %10 = tpu.matmul %9, %6, %cst_10 {dimension_numbers = #tpu.dot_dimension_numbers<[1], [0], [0], [1], [0, 0, 1, 1], [], []>} : vector<8x5xf32>, vector<5x256xf32>, vector<8x256xf32> -> vector<8x256xf32>
    %11 = arith.addf %8, %10 : vector<8x256xf32>
    %c0_11 = arith.constant 0 : index
    %c0_12 = arith.constant 0 : index
    %12 = vector.load %arg6[%c0_11, %c0_12] : memref<8x1xf32, #tpu.memory_space<vmem>>, vector<8x1xf32>
    %13 = vector.broadcast %12 : vector<8x1xf32> to vector<8x256xf32>
    %14 = arith.mulf %11, %13 : vector<8x256xf32>
    %c0_13 = arith.constant 0 : index
    %c0_14 = arith.constant 0 : index
    %15 = vector.load %arg7[%c0_13, %c0_14] : memref<8x1xf32, #tpu.memory_space<vmem>>, vector<8x1xf32>
    %16 = vector.broadcast %15 : vector<8x1xf32> to vector<8x256xf32>
    %17 = arith.addf %14, %16 : vector<8x256xf32>
    %cst_15 = arith.constant 0.000000e+00 : f32
    %18 = vector.broadcast %cst_15 : f32 to vector<8x256xf32>
    %19 = arith.maximumf %17, %18 : vector<8x256xf32>
    %c0_16 = arith.constant 0 : index
    %c0_17 = arith.constant 0 : index
    %20 = vector.load %arg12[%c0_16, %c0_17] : memref<8x1xf32, #tpu.memory_space<vmem>>, vector<8x1xf32>
    %cst_18 = arith.constant dense<0.000000e+00> : vector<8xf32>
    %21 = vector.multi_reduction <add>, %19, %cst_18 [1] : vector<8x256xf32> to vector<8xf32>
    %22 = vector.shape_cast %21 : vector<8xf32> to vector<8x1xf32>
    %23 = arith.addf %20, %22 : vector<8x1xf32>
    %c0_19 = arith.constant 0 : index
    %c0_20 = arith.constant 0 : index
    %24 = vector.load %arg12[%c0_19, %c0_20] : memref<8x1xf32, #tpu.memory_space<vmem>>, vector<8x1xf32>
    tpu.vector_store %arg12[%c0_19, %c0_20], %23 {strides = array<i32>} : memref<8x1xf32, #tpu.memory_space<vmem>>, vector<8x1xf32>,
    %c0_i32_21 = arith.constant 0 : i32
    %25 = arith.cmpi eq, %arg1, %c0_i32_21 : i32
    %26 = arith.extui %25 : i1 to i32
    %c0_i32_22 = arith.constant 0 : i32
    %27 = arith.cmpi ne, %26, %c0_i32_22 : i32
    scf.if %27 {
      %c0_23 = arith.constant 0 : index
      %c0_24 = arith.constant 0 : index
      %28 = vector.load %arg12[%c0_23, %c0_24] : memref<8x1xf32, #tpu.memory_space<vmem>>, vector<8x1xf32>
      %cst_25 = arith.constant 3.906250e-03 : f32
      %29 = vector.broadcast %cst_25 : f32 to vector<8x1xf32>
      %30 = arith.mulf %28, %29 : vector<8x1xf32>
      %c0_26 = arith.constant 0 : index
      %c0_27 = arith.constant 0 : index
      %31 = vector.load %arg8[%c0_26, %c0_27] : memref<8x8xf32, #tpu.memory_space<vmem>>, vector<8x8xf32>
      %cst_28 = arith.constant dense<0.000000e+00> : vector<8x1xf32>
      %32 = tpu.matmul %31, %30, %cst_28 {dimension_numbers = #tpu.dot_dimension_numbers<[1], [0], [0], [1], [0, 0, 1, 1], [], []>} : vector<8x8xf32>, vector<8x1xf32>, vector<8x1xf32> -> vector<8x1xf32>
      %c0_29 = arith.constant 0 : index
      %c0_30 = arith.constant 0 : index
      %33 = vector.load %arg9[%c0_29, %c0_30] : memref<8x1xf32, #tpu.memory_space<vmem>>, vector<8x1xf32>
      %34 = arith.mulf %32, %33 : vector<8x1xf32>
      %c0_31 = arith.constant 0 : index
      %c0_32 = arith.constant 0 : index
      %35 = vector.load %arg10[%c0_31, %c0_32] : memref<8x1xf32, #tpu.memory_space<vmem>>, vector<8x1xf32>
      %36 = arith.addf %34, %35 : vector<8x1xf32>
      %37 = arith.negf %36 : vector<8x1xf32>
      %38 = math.exp %37 : vector<8x1xf32>
      %cst_33 = arith.constant 1.000000e+00 : f32
      %39 = vector.broadcast %cst_33 : f32 to vector<8x1xf32>
      %40 = arith.addf %39, %38 : vector<8x1xf32>
      %41 = arith.divf %39, %40 : vector<8x1xf32>
      %42 = vector.shape_cast %41 : vector<8x1xf32> to vector<1x8x1xf32>
      %c0_34 = arith.constant 0 : index
      %c0_35 = arith.constant 0 : index
      %c0_36 = arith.constant 0 : index
      %43 = vector.load %arg11[%c0_34, %c0_35, %c0_36] : memref<1x8x1xf32, #tpu.memory_space<vmem>>, vector<1x8x1xf32>
      tpu.vector_store %arg11[%c0_34, %c0_35, %c0_36], %42 {strides = array<i32>} : memref<1x8x1xf32, #tpu.memory_space<vmem>>, vector<1x8x1xf32>,
    } else {
    }
    return
  }
  func.func @transform_0(%arg0: i32, %arg1: i32) -> (i32, i32, i32) {
    %c0_i32 = arith.constant 0 : i32
    %c0_i32_0 = arith.constant 0 : i32
    return %arg0, %c0_i32, %arg1 : i32, i32, i32
  }
  func.func @transform_1(%arg0: i32, %arg1: i32) -> (i32, i32, i32) {
    %c0_i32 = arith.constant 0 : i32
    %c0_i32_0 = arith.constant 0 : i32
    return %arg0, %c0_i32, %arg1 : i32, i32, i32
  }
  func.func @transform_2(%arg0: i32, %arg1: i32) -> (i32, i32) {
    %c0_i32 = arith.constant 0 : i32
    %c0_i32_0 = arith.constant 0 : i32
    %c0_i32_1 = arith.constant 0 : i32
    return %c0_i32, %c0_i32_0 : i32, i32
  }
  func.func @transform_3(%arg0: i32, %arg1: i32) -> (i32, i32) {
    %c0_i32 = arith.constant 0 : i32
    %c0_i32_0 = arith.constant 0 : i32
    %c0_i32_1 = arith.constant 0 : i32
    return %c0_i32, %c0_i32_0 : i32, i32
  }
  func.func @transform_4(%arg0: i32, %arg1: i32) -> (i32, i32) {
    %c0_i32 = arith.constant 0 : i32
    %c0_i32_0 = arith.constant 0 : i32
    %c0_i32_1 = arith.constant 0 : i32
    return %c0_i32, %c0_i32_0 : i32, i32
  }
  func.func @transform_5(%arg0: i32, %arg1: i32) -> (i32, i32) {
    %c0_i32 = arith.constant 0 : i32
    %c0_i32_0 = arith.constant 0 : i32
    %c0_i32_1 = arith.constant 0 : i32
    return %c0_i32, %c0_i32_0 : i32, i32
  }
  func.func @transform_6(%arg0: i32, %arg1: i32) -> (i32, i32) {
    %c0_i32 = arith.constant 0 : i32
    %c0_i32_0 = arith.constant 0 : i32
    %c0_i32_1 = arith.constant 0 : i32
    return %c0_i32, %c0_i32_0 : i32, i32
  }
  func.func @transform_7(%arg0: i32, %arg1: i32) -> (i32, i32) {
    %c0_i32 = arith.constant 0 : i32
    %c0_i32_0 = arith.constant 0 : i32
    %c0_i32_1 = arith.constant 0 : i32
    return %c0_i32, %c0_i32_0 : i32, i32
  }
  func.func @transform_8(%arg0: i32, %arg1: i32) -> (i32, i32) {
    %c0_i32 = arith.constant 0 : i32
    %c0_i32_0 = arith.constant 0 : i32
    %c0_i32_1 = arith.constant 0 : i32
    return %c0_i32, %c0_i32_0 : i32, i32
  }
  func.func @transform_9(%arg0: i32, %arg1: i32) -> (i32, i32, i32) {
    %c0_i32 = arith.constant 0 : i32
    %c0_i32_0 = arith.constant 0 : i32
    %c0_i32_1 = arith.constant 0 : i32
    return %arg0, %c0_i32, %c0_i32_0 : i32, i32, i32
  }
}

</mosaic_0001>

<llo_original>
// kernel: tpu_custom_call.1
$region0: #{tpu_custom_call.1}
  #allocation0 [shape = 'u32[]', space=smem, size = 0x4, offset = 0x4, fixed_abs, tag = 'smem constant byte address 0x4 - core index']
  #allocation1 [shape = 'u32[144,128]{1,0:T(1,128)}', space=vmem, size = 0x12000, scoped, tag = 'internal scratch']
  #allocation2 [shape = 'f32[8,1]{1,0:T(8,128)}', space=vmem, size = 0x1000, scoped, tag = 'scratch operand']
  %s0 = inlined_call_operand.vmem [shape: f32[2,3,256], index: 0, kind: input, shape index: {}]
  %s1 = inlined_call_operand.vmem [shape: f32[2,5,256], index: 1, kind: input, shape index: {}]
  %s2 = inlined_call_operand.vmem [shape: f32[8,3], index: 2, kind: input, shape index: {}]
  %s3 = inlined_call_operand.vmem [shape: f32[8,5], index: 3, kind: input, shape index: {}]
  %s4 = inlined_call_operand.vmem [shape: f32[8,1], index: 4, kind: input, shape index: {}]
  %s5 = inlined_call_operand.vmem [shape: f32[8,1], index: 5, kind: input, shape index: {}]
  %s6 = inlined_call_operand.vmem [shape: f32[8,8], index: 6, kind: input, shape index: {}]
  %s7 = inlined_call_operand.vmem [shape: f32[8,1], index: 7, kind: input, shape index: {}]
  %s8 = inlined_call_operand.vmem [shape: f32[8,1], index: 8, kind: input, shape index: {}]
  %s9 = inlined_call_operand.vmem [shape: f32[2,8,1], index: 9, kind: output, shape index: {}]
  %s10 = sld [smem:[#allocation0]]
  $region77: #{tpu_custom_call.1} parent=0
    _
  %s12 = ssub.s32 1, %s10
  %s13 = scalar_select 0, %s12, %s10
  loop: start=0, step=1, limit=4
  $region2: #{tpu_custom_call.1} parent=0 // loop_pre_header
    _
  $region3: #{tpu_custom_call.1} parent=0 // loop_header
    %s15 = sphi 0, %s19
    %p16 = scmp.ge.s32.totalorder %s15, 4
    %s22 = sphi 0, %s34
    %s23 = sphi 0, %s30
    %s24 = sphi 0, %s22
    %s25 = sphi 0, %s23
    %s26 = sphi 0, %s24
    %s27 = sphi 0, %s25
    %s39 = sphi 0, %s41
    %s42 = sphi 0, %s39
    %s43 = sphi 0, %s42
    %s59 = sphi 0, %s43
    %s67 = sphi 0, %s69
    %s70 = sphi 0, %s67
    %s71 = sphi 0, %s70
    %s87 = sphi 0, %s71
    %s91 = sphi 0, %s91
    %s93 = sphi 0, %s91
    %s94 = sphi 0, %s93
    %s108 = sphi 0, %s94
    %s112 = sphi 0, %s112
    %s114 = sphi 0, %s112
    %s115 = sphi 0, %s114
    %s129 = sphi 0, %s115
    %s133 = sphi 0, %s133
    %s135 = sphi 0, %s133
    %s136 = sphi 0, %s135
    %s150 = sphi 0, %s136
    %s154 = sphi 0, %s154
    %s156 = sphi 0, %s154
    %s157 = sphi 0, %s156
    %s171 = sphi 0, %s157
    %s175 = sphi 0, %s175
    %s177 = sphi 0, %s175
    %s178 = sphi 0, %s177
    %s192 = sphi 0, %s178
    %s196 = sphi 0, %s196
    %s198 = sphi 0, %s196
    %s199 = sphi 0, %s198
    %s213 = sphi 0, %s199
    %s217 = sphi 0, %s217
    %s219 = sphi 0, %s217
    %s220 = sphi 0, %s219
    %s234 = sphi 0, %s220
    %s240 = sphi 0, %s242
    %s243 = sphi 0, %s240
    %s244 = sphi 0, %s243
    %s260 = sphi 0, %s244
  $region4: #{tpu_custom_call.1} parent=0 // loop_header_branch
    %18 = sbr.rel (%p16) target = $region8
  $region5: #{tpu_custom_call.1} parent=0 // loop_body
    %s20 = ssub.s32 %s15, 1
    %s21 = ssub.s32 %s15, 2
    %s28 = sadd.s32 1, %s23
    %p29 = scmp.ge.s32.totalorder %s28, 1
    %s30 = scalar_select %p29, 0, %s28
    %s31 = sadd.s32 1, %s22
    %s32 = scalar_select %p29, %s31, %s22
    %p33 = scmp.ge.s32.totalorder %s32, 2
    %s34 = scalar_select %p33, 0, %s32
    %s35 = ssub.s32 %s22, %s34
    %s36 = ssub.s32 %s23, %s30
    %s37 = sor.u32 %s35, %s36
    %p38 = scmp.eq.s32.totalorder %s37, 0
    %s40 = sadd.s32 %s39, 1
    %s41 = scalar_select %p38, %s39, %s40
    %p44 = pneg %p38
    %p45 = scmp.eq.s32.totalorder %s15, 1
    %p46 = por %p44, %p45
    %p47 = scmp.ne.s32.totalorder %s39, %s42
    %p48 = scmp.eq.s32.totalorder %s15, 0
    %p49 = por %p47, %p48
    %p50 = scmp.ne.s32.totalorder %s39, %s42
    %p51 = scmp.eq.s32.totalorder %s20, 1
    %p52 = por %p50, %p51
    %p53 = scmp.ne.s32.totalorder %s42, %s43
    %p54 = scmp.eq.s32.totalorder %s20, 0
    %p55 = por %p53, %p54
    %p56 = scmp.ne.s32.totalorder %s42, %s43
    %p57 = scmp.eq.s32.totalorder %s21, 1
    %p58 = por %p56, %p57
    %p60 = scmp.ne.s32.totalorder %s43, %s59
    %p61 = scmp.eq.s32.totalorder %s21, 0
    %p62 = por %p60, %p61
    %s63 = ssub.s32 %s22, %s34
    %s64 = ssub.s32 %s23, %s30
    %s65 = sor.u32 %s63, %s64
    %p66 = scmp.eq.s32.totalorder %s65, 0
    %s68 = sadd.s32 %s67, 1
    %s69 = scalar_select %p66, %s67, %s68
    %p72 = pneg %p66
    %p73 = scmp.eq.s32.totalorder %s15, 1
    %p74 = por %p72, %p73
    %p75 = scmp.ne.s32.totalorder %s67, %s70
    %p76 = scmp.eq.s32.totalorder %s15, 0
    %p77 = por %p75, %p76
    %p78 = scmp.ne.s32.totalorder %s67, %s70
    %p79 = scmp.eq.s32.totalorder %s20, 1
    %p80 = por %p78, %p79
    %p81 = scmp.ne.s32.totalorder %s70, %s71
    %p82 = scmp.eq.s32.totalorder %s20, 0
    %p83 = por %p81, %p82
    %p84 = scmp.ne.s32.totalorder %s70, %s71
    %p85 = scmp.eq.s32.totalorder %s21, 1
    %p86 = por %p84, %p85
    %p88 = scmp.ne.s32.totalorder %s71, %s87
    %p89 = scmp.eq.s32.totalorder %s21, 0
    %p90 = por %p88, %p89
    %s92 = sadd.s32 %s91, 1
    %p95 = scmp.eq.s32.totalorder %s15, 1
    %p96 = scmp.ne.s32.totalorder %s91, %s93
    %p97 = scmp.eq.s32.totalorder %s15, 0
    %p98 = por %p96, %p97
    %p99 = scmp.ne.s32.totalorder %s91, %s93
    %p100 = scmp.eq.s32.totalorder %s20, 1
    %p101 = por %p99, %p100
    %p102 = scmp.ne.s32.totalorder %s93, %s94
    %p103 = scmp.eq.s32.totalorder %s20, 0
    %p104 = por %p102, %p103
    %p105 = scmp.ne.s32.totalorder %s93, %s94
    %p106 = scmp.eq.s32.totalorder %s21, 1
    %p107 = por %p105, %p106
    %p109 = scmp.ne.s32.totalorder %s94, %s108
    %p110 = scmp.eq.s32.totalorder %s21, 0
    %p111 = por %p109, %p110
    %s113 = sadd.s32 %s112, 1
    %p116 = scmp.eq.s32.totalorder %s15, 1
    %p117 = scmp.ne.s32.totalorder %s112, %s114
    %p118 = scmp.eq.s32.totalorder %s15, 0
    %p119 = por %p117, %p118
    %p120 = scmp.ne.s32.totalorder %s112, %s114
    %p121 = scmp.eq.s32.totalorder %s20, 1
    %p122 = por %p120, %p121
    %p123 = scmp.ne.s32.totalorder %s114, %s115
    %p124 = scmp.eq.s32.totalorder %s20, 0
    %p125 = por %p123, %p124
    %p126 = scmp.ne.s32.totalorder %s114, %s115
    %p127 = scmp.eq.s32.totalorder %s21, 1
    %p128 = por %p126, %p127
    %p130 = scmp.ne.s32.totalorder %s115, %s129
    %p131 = scmp.eq.s32.totalorder %s21, 0
    %p132 = por %p130, %p131
    %s134 = sadd.s32 %s133, 1
    %p137 = scmp.eq.s32.totalorder %s15, 1
    %p138 = scmp.ne.s32.totalorder %s133, %s135
    %p139 = scmp.eq.s32.totalorder %s15, 0
    %p140 = por %p138, %p139
    %p141 = scmp.ne.s32.totalorder %s133, %s135
    %p142 = scmp.eq.s32.totalorder %s20, 1
    %p143 = por %p141, %p142
    %p144 = scmp.ne.s32.totalorder %s135, %s136
    %p145 = scmp.eq.s32.totalorder %s20, 0
    %p146 = por %p144, %p145
    %p147 = scmp.ne.s32.totalorder %s135, %s136
    %p148 = scmp.eq.s32.totalorder %s21, 1
    %p149 = por %p147, %p148
    %p151 = scmp.ne.s32.totalorder %s136, %s150
    %p152 = scmp.eq.s32.totalorder %s21, 0
    %p153 = por %p151, %p152
    %s155 = sadd.s32 %s154, 1
    %p158 = scmp.eq.s32.totalorder %s15, 1
    %p159 = scmp.ne.s32.totalorder %s154, %s156
    %p160 = scmp.eq.s32.totalorder %s15, 0
    %p161 = por %p159, %p160
    %p162 = scmp.ne.s32.totalorder %s154, %s156
    %p163 = scmp.eq.s32.totalorder %s20, 1
    %p164 = por %p162, %p163
    %p165 = scmp.ne.s32.totalorder %s156, %s157
    %p166 = scmp.eq.s32.totalorder %s20, 0
    %p167 = por %p165, %p166
    %p168 = scmp.ne.s32.totalorder %s156, %s157
    %p169 = scmp.eq.s32.totalorder %s21, 1
    %p170 = por %p168, %p169
    %p172 = scmp.ne.s32.totalorder %s157, %s171
    %p173 = scmp.eq.s32.totalorder %s21, 0
    %p174 = por %p172, %p173
    %s176 = sadd.s32 %s175, 1
    %p179 = scmp.eq.s32.totalorder %s15, 1
    %p180 = scmp.ne.s32.totalorder %s175, %s177
    %p181 = scmp.eq.s32.totalorder %s15, 0
    %p182 = por %p180, %p181
    %p183 = scmp.ne.s32.totalorder %s175, %s177
    %p184 = scmp.eq.s32.totalorder %s20, 1
    %p185 = por %p183, %p184
    %p186 = scmp.ne.s32.totalorder %s177, %s178
    %p187 = scmp.eq.s32.totalorder %s20, 0
    %p188 = por %p186, %p187
    %p189 = scmp.ne.s32.totalorder %s177, %s178
    %p190 = scmp.eq.s32.totalorder %s21, 1
    %p191 = por %p189, %p190
    %p193 = scmp.ne.s32.totalorder %s178, %s192
    %p194 = scmp.eq.s32.totalorder %s21, 0
    %p195 = por %p193, %p194
    %s197 = sadd.s32 %s196, 1
    %p200 = scmp.eq.s32.totalorder %s15, 1
    %p201 = scmp.ne.s32.totalorder %s196, %s198
    %p202 = scmp.eq.s32.totalorder %s15, 0
    %p203 = por %p201, %p202
    %p204 = scmp.ne.s32.totalorder %s196, %s198
    %p205 = scmp.eq.s32.totalorder %s20, 1
    %p206 = por %p204, %p205
    %p207 = scmp.ne.s32.totalorder %s198, %s199
    %p208 = scmp.eq.s32.totalorder %s20, 0
    %p209 = por %p207, %p208
    %p210 = scmp.ne.s32.totalorder %s198, %s199
    %p211 = scmp.eq.s32.totalorder %s21, 1
    %p212 = por %p210, %p211
    %p214 = scmp.ne.s32.totalorder %s199, %s213
    %p215 = scmp.eq.s32.totalorder %s21, 0
    %p216 = por %p214, %p215
    %s218 = sadd.s32 %s217, 1
    %p221 = scmp.eq.s32.totalorder %s15, 1
    %p222 = scmp.ne.s32.totalorder %s217, %s219
    %p223 = scmp.eq.s32.totalorder %s15, 0
    %p224 = por %p222, %p223
    %p225 = scmp.ne.s32.totalorder %s217, %s219
    %p226 = scmp.eq.s32.totalorder %s20, 1
    %p227 = por %p225, %p226
    %p228 = scmp.ne.s32.totalorder %s219, %s220
    %p229 = scmp.eq.s32.totalorder %s20, 0
    %p230 = por %p228, %p229
    %p231 = scmp.ne.s32.totalorder %s219, %s220
    %p232 = scmp.eq.s32.totalorder %s21, 1
    %p233 = por %p231, %p232
    %p235 = scmp.ne.s32.totalorder %s220, %s234
    %p236 = scmp.eq.s32.totalorder %s21, 0
    %p237 = por %p235, %p236
    %s238 = ssub.s32 %s22, %s34
    %p239 = scmp.eq.s32.totalorder %s238, 0
    %s241 = sadd.s32 %s240, 1
    %s242 = scalar_select %p239, %s240, %s241
    %p245 = pneg %p239
    %p246 = scmp.eq.s32.totalorder %s15, 1
    %p247 = por %p245, %p246
    %p248 = scmp.ne.s32.totalorder %s240, %s243
    %p249 = scmp.eq.s32.totalorder %s15, 0
    %p250 = por %p248, %p249
    %p251 = scmp.ne.s32.totalorder %s240, %s243
    %p252 = scmp.eq.s32.totalorder %s20, 1
    %p253 = por %p251, %p252
    %p254 = scmp.ne.s32.totalorder %s243, %s244
    %p255 = scmp.eq.s32.totalorder %s20, 0
    %p256 = por %p254, %p255
    %p257 = scmp.ne.s32.totalorder %s243, %s244
    %p258 = scmp.eq.s32.totalorder %s21, 1
    %p259 = por %p257, %p258
    %p261 = scmp.ne.s32.totalorder %s244, %s260
    %p262 = scmp.eq.s32.totalorder %s21, 0
    %p263 = por %p261, %p262
    %p264 = scmp.le.s32.totalorder 1, %s15
    %p265 = scmp.lt.s32.totalorder %s15, 3
    %p266 = pnand %p264, %p265
    %p267 = pneg %p266
    // Predicated region
    $region9: #{tpu_custom_call.1} parent=5 // pred_check
      _
    $region10: #{tpu_custom_call.1} parent=5 // pred_check_branch
      %269 = sbr.rel (%p266) target = $region12
    $region11: #{tpu_custom_call.1} parent=5 // pred_region
      %s270 = ssub.s32 %s15, 1
      // Predicated region
      $region13: #{tpu_custom_call.1} parent=11 // pred_check
        %p271 = pneg %p104
      $region14: #{tpu_custom_call.1} parent=11 // pred_check_branch
        %273 = sbr.rel (%p271) target = $region16
      $region15: #{tpu_custom_call.1} parent=11 // pred_region
        _
      $region16: #{tpu_custom_call.1} parent=11 // pred_fallthru
        _
      // Predicated region
      $region17: #{tpu_custom_call.1} parent=11 // pred_check
        %p274 = pneg %p125
      $region18: #{tpu_custom_call.1} parent=11 // pred_check_branch
        %276 = sbr.rel (%p274) target = $region20
      $region19: #{tpu_custom_call.1} parent=11 // pred_region
        _
      $region20: #{tpu_custom_call.1} parent=11 // pred_fallthru
        _
      // Predicated region
      $region21: #{tpu_custom_call.1} parent=11 // pred_check
        %p277 = pneg %p146
      $region22: #{tpu_custom_call.1} parent=11 // pred_check_branch
        %279 = sbr.rel (%p277) target = $region24
      $region23: #{tpu_custom_call.1} parent=11 // pred_region
        _
      $region24: #{tpu_custom_call.1} parent=11 // pred_fallthru
        _
      // Predicated region
      $region25: #{tpu_custom_call.1} parent=11 // pred_check
        %p280 = pneg %p167
      $region26: #{tpu_custom_call.1} parent=11 // pred_check_branch
        %282 = sbr.rel (%p280) target = $region28
      $region27: #{tpu_custom_call.1} parent=11 // pred_region
        _
      $region28: #{tpu_custom_call.1} parent=11 // pred_fallthru
        _
      // Predicated region
      $region29: #{tpu_custom_call.1} parent=11 // pred_check
        %p283 = pneg %p188
      $region30: #{tpu_custom_call.1} parent=11 // pred_check_branch
        %285 = sbr.rel (%p283) target = $region32
      $region31: #{tpu_custom_call.1} parent=11 // pred_region
        _
      $region32: #{tpu_custom_call.1} parent=11 // pred_fallthru
        _
      // Predicated region
      $region33: #{tpu_custom_call.1} parent=11 // pred_check
        %p286 = pneg %p209
      $region34: #{tpu_custom_call.1} parent=11 // pred_check_branch
        %288 = sbr.rel (%p286) target = $region36
      $region35: #{tpu_custom_call.1} parent=11 // pred_region
        _
      $region36: #{tpu_custom_call.1} parent=11 // pred_fallthru
        _
      // Predicated region
      $region37: #{tpu_custom_call.1} parent=11 // pred_check
        %p289 = pneg %p230
      $region38: #{tpu_custom_call.1} parent=11 // pred_check_branch
        %291 = sbr.rel (%p289) target = $region40
      $region39: #{tpu_custom_call.1} parent=11 // pred_region
        _
      $region40: #{tpu_custom_call.1} parent=11 // pred_fallthru
        _
    $region12: #{tpu_custom_call.1} parent=5 // pred_fallthru
      _
    %p292 = scmp.lt.s32.totalorder %s15, 2
    // Predicated region
    $region41: #{tpu_custom_call.1} parent=5 // pred_check
      %p293 = pneg %p292
    $region42: #{tpu_custom_call.1} parent=5 // pred_check_branch
      %295 = sbr.rel (%p293) target = $region44
    $region43: #{tpu_custom_call.1} parent=5 // pred_region
      // Predicated region
      $region45: #{tpu_custom_call.1} parent=43 // pred_check
        %p296 = pneg %p49
      $region46: #{tpu_custom_call.1} parent=43 // pred_check_branch
        %298 = sbr.rel (%p296) target = $region48
      $region47: #{tpu_custom_call.1} parent=43 // pred_region
        %s299 = smul.u32 2, %s23
        %p300 = scmp.lt.s32.totalorder %s22, 1
        %s301 = scalar_select %p300, %s22, 1
        %p302 = scmp.lt.s32.totalorder %s299, 1
        %s303 = scalar_select %p302, %s299, 1
        %s304 = smul.addr %s301, 2
        %s305 = sadd.s32 %s303, %s304
        %s306 = smul.addr %s305, 4
        %s307 = scalar_lea.vmem %s0, %s306
        %s308 = smul.u32 2, %s23
      $region48: #{tpu_custom_call.1} parent=43 // pred_fallthru
        _
      // Predicated region
      $region49: #{tpu_custom_call.1} parent=43 // pred_check
        %p309 = pneg %p77
      $region50: #{tpu_custom_call.1} parent=43 // pred_check_branch
        %311 = sbr.rel (%p309) target = $region52
      $region51: #{tpu_custom_call.1} parent=43 // pred_region
        %s312 = smul.u32 2, %s23
        %p313 = scmp.lt.s32.totalorder %s22, 1
        %s314 = scalar_select %p313, %s22, 1
        %p315 = scmp.lt.s32.totalorder %s312, 1
        %s316 = scalar_select %p315, %s312, 1
        %s317 = smul.addr %s314, 2
        %s318 = sadd.s32 %s316, %s317
        %s319 = smul.addr %s318, 8
        %s320 = scalar_lea.vmem %s1, %s319
        %s321 = smul.u32 2, %s23
      $region52: #{tpu_custom_call.1} parent=43 // pred_fallthru
        _
    $region44: #{tpu_custom_call.1} parent=5 // pred_fallthru
      _
    %p322 = scmp.le.s32.totalorder 1, %s15
    %p323 = scmp.lt.s32.totalorder %s15, 3
    %p324 = pnand %p322, %p323
    %p325 = pneg %p324
    // Predicated region
    $region53: #{tpu_custom_call.1} parent=5 // pred_check
      _
    $region54: #{tpu_custom_call.1} parent=5 // pred_check_branch
      %327 = sbr.rel (%p324) target = $region56
    $region55: #{tpu_custom_call.1} parent=5 // pred_region
      %s328 = ssub.s32 %s15, 1
      %s329 = smul.u32 2, %s25
      %p330 = scmp.lt.s32.totalorder %s24, 1
      %s331 = scalar_select %p330, %s24, 1
      %p332 = scmp.lt.s32.totalorder %s329, 1
      %s333 = scalar_select %p332, %s329, 1
      %s334 = smul.addr %s331, 2
      %s335 = sadd.s32 %s333, %s334
      %s336 = smul.addr %s335, 4
      %s337 = scalar_lea.vmem %s0, %s336
      %p338 = pneg %p55
      %p339 = pneg %p52
      %s340 = smul.u32 2, %s25
      %p341 = scmp.lt.s32.totalorder %s24, 1
      %s342 = scalar_select %p341, %s24, 1
      %p343 = scmp.lt.s32.totalorder %s340, 1
      %s344 = scalar_select %p343, %s340, 1
      %s345 = smul.addr %s342, 2
      %s346 = sadd.s32 %s344, %s345
      %s347 = smul.addr %s346, 8
      %s348 = scalar_lea.vmem %s1, %s347
      %p349 = pneg %p83
      %p350 = pneg %p80
      %p351 = pneg %p104
      %p352 = pneg %p101
      %p353 = pneg %p125
      %p354 = pneg %p122
      %p355 = pneg %p146
      %p356 = pneg %p143
      %p357 = pneg %p167
      %p358 = pneg %p164
      %p359 = pneg %p188
      %p360 = pneg %p185
      %p361 = pneg %p209
      %p362 = pneg %p206
      %p363 = pneg %p230
      %p364 = pneg %p227
      %p365 = pneg %p256
      %p366 = pneg %p253
      %p367 = scmp.lt.s32.totalorder %s24, 1
      %s368 = scalar_select %p367, %s24, 1
      %s369 = smul.addr %s368, 8
      %s370 = scalar_lea.vmem %s9, %s369
      %s371 = smul.u32 2, %s25
      %p372 = scmp.lt.s32.totalorder %s24, 1
      %s373 = scalar_select %p372, %s24, 1
      %p374 = scmp.lt.s32.totalorder %s371, 1
      %s375 = scalar_select %p374, %s371, 1
      %s376 = smul.addr %s373, 2
      %s377 = sadd.s32 %s375, %s376
      %s378 = smul.addr %s377, 4
      %s379 = scalar_lea.vmem %s0, %s378
      %s380 = smul.u32 2, %s25
      %s381 = smul.u32 2, %s25
      %p382 = scmp.lt.s32.totalorder %s24, 1
      %s383 = scalar_select %p382, %s24, 1
      %p384 = scmp.lt.s32.totalorder %s381, 1
      %s385 = scalar_select %p384, %s381, 1
      %s386 = smul.addr %s383, 2
      %s387 = sadd.s32 %s385, %s386
      %s388 = smul.addr %s387, 8
      %s389 = scalar_lea.vmem %s1, %s388
      %s390 = smul.u32 2, %s25
      %p391 = scmp.lt.s32.totalorder %s24, 1
      %s392 = scalar_select %p391, %s24, 1
      %s393 = smul.addr %s392, 8
      %s394 = scalar_lea.vmem %s9, %s393
      %p395 = scmp.eq.s32.totalorder %s25, 0
      // Predicated region
      $region57: #{tpu_custom_call.1} parent=55 // pred_check
        %p396 = pneg %p395
      $region58: #{tpu_custom_call.1} parent=55 // pred_check_branch
        %398 = sbr.rel (%p396) target = $region60
      $region59: #{tpu_custom_call.1} parent=55 // pred_region
        %vm399 = vcmask 7168
        %400 = vst.msk [vmem:[#allocation2] sm:$0xff] %vm399, 0.0
      $region60: #{tpu_custom_call.1} parent=55 // pred_fallthru
        _
      %v401 = vld [vmem:[%s379] sm:$0x77]
      %v402 = vld [vmem:[%s389] sm:$0x1f]
      %v403 = vld [vmem:[%s389 + $0x8] sm:$0x1f]
      %v404 = vld [vmem:[%s2] sm:$0xff]
      %v405 = vld [vmem:[%s3] sm:$0xff]
      %vm406 = vcmask 39936
      %v408 = vsel %vm406, %v405, 0
      %vm410 = vcmask 1044480
      %v412 = vsel %vm410, %v402, 0
      %v415 = vsel %vm410, %v403, 0
      %417 = vmatprep.subr.mxu0 0.0
      %418 = vmatpush1.msra.mxu0 0.0
      %419 = vmatprep.subr.mxu0 0.0
      %420 = vmatpush1.msra.mxu0 0.0
      %421 = vmatprep.subr.mxu0 0.0
      %422 = vmatpush1.msra.mxu0 0.0
      %423 = vmatprep.subr.mxu0 0.0
      %424 = vmatpush1.msra.mxu0 0.0
      %425 = vmatprep.subr.mxu0 0.0
      %426 = vmatpush1.msra.mxu0 0.0
      %427 = vmatprep.subr.mxu0 0.0
      %428 = vmatpush1.msra.mxu0 0.0
      %429 = vmatprep.subr.mxu0 0.0
      %430 = vmatpush1.msra.mxu0 0.0
      %431 = vmatprep.subr.mxu0 0.0
      %432 = vmatpush1.msra.mxu0 0.0
      %433 = vmatprep.subr.mxu0 0.0
      %434 = vmatpush1.msra.mxu0 0.0
      %435 = vmatprep.subr.mxu0 0.0
      %436 = vmatpush1.msra.mxu0 0.0
      %437 = vmatprep.subr.mxu0 0.0
      %438 = vmatpush1.msra.mxu0 0.0
      %439 = vmatprep.subr.mxu0 0.0
      %440 = vmatpush1.msra.mxu0 0.0
      %441 = vmatprep.subr.mxu0 0.0
      %442 = vmatpush1.msra.mxu0 0.0
      %443 = vmatprep.subr.mxu0 0.0
      %444 = vmatpush1.msra.mxu0 0.0
      %445 = vmatprep.subr.mxu0 0.0
      %446 = vmatpush1.msra.mxu0 0.0
      %447 = vmatprep.subr.mxu0 %v415
      %448 = vmatpush1.msra.mxu0 %v412
      %449 = vmatprep.subr.mxu0 0.0
      %450 = vmatpush2.msra.mxu0 0.0
      %451 = vmatprep.subr.mxu0 0.0
      %452 = vmatpush2.msra.mxu0 0.0
      %453 = vmatprep.subr.mxu0 0.0
      %454 = vmatpush2.msra.mxu0 0.0
      %455 = vmatprep.subr.mxu0 0.0
      %456 = vmatpush2.msra.mxu0 0.0
      %457 = vmatprep.subr.mxu0 0.0
      %458 = vmatpush2.msra.mxu0 0.0
      %459 = vmatprep.subr.mxu0 0.0
      %460 = vmatpush2.msra.mxu0 0.0
      %461 = vmatprep.subr.mxu0 0.0
      %462 = vmatpush2.msra.mxu0 0.0
      %463 = vmatprep.subr.mxu0 0.0
      %464 = vmatpush2.msra.mxu0 0.0
      %465 = vmatprep.subr.mxu0 0.0
      %466 = vmatpush2.msra.mxu0 0.0
      %467 = vmatprep.subr.mxu0 0.0
      %468 = vmatpush2.msra.mxu0 0.0
      %469 = vmatprep.subr.mxu0 0.0
      %470 = vmatpush2.msra.mxu0 0.0
      %471 = vmatprep.subr.mxu0 0.0
      %472 = vmatpush2.msra.mxu0 0.0
      %473 = vmatprep.subr.mxu0 0.0
      %474 = vmatpush2.msra.mxu0 0.0
      %475 = vmatprep.subr.mxu0 0.0
      %476 = vmatpush2.msra.mxu0 0.0
      %477 = vmatprep.subr.mxu0 0.0
      %478 = vmatpush2.msra.mxu0 0.0
      %479 = vmatprep.subr.mxu0 0.0
      %480 = vmatpush2.msra.mxu0 0.0
      %481 = vmatprep.mubr.f32.mxu0 0.0
      %482 = vmatmul.mubr.f32.gmra.mxu0 %v408
      %v483 = vpop.f32.mrf.mxu0
      %v484 = vadd.f32 0.0, %v483
      %v485 = vpop.f32.mrf.mxu0
      %v486 = vadd.f32 0.0, %v485
      %487 = vdwg.mxu0
      %v489 = vcombine.high %v401, %v401
      %vm490 = vcmask 23552
      %v492 = vsel %vm490, %v404, 0
      %vm494 = vcmask 1042432
      %v495 = vsel %vm494, %v401, 0
      %v497 = vsel %vm494, %v489, 0
      %499 = vmatprep.subr.mxu0 0.0
      %500 = vmatpush1.msra.mxu0 0.0
      %501 = vmatprep.subr.mxu0 0.0
      %502 = vmatpush1.msra.mxu0 0.0
      %503 = vmatprep.subr.mxu0 0.0
      %504 = vmatpush1.msra.mxu0 0.0
      %505 = vmatprep.subr.mxu0 0.0
      %506 = vmatpush1.msra.mxu0 0.0
      %507 = vmatprep.subr.mxu0 0.0
      %508 = vmatpush1.msra.mxu0 0.0
      %509 = vmatprep.subr.mxu0 0.0
      %510 = vmatpush1.msra.mxu0 0.0
      %511 = vmatprep.subr.mxu0 0.0
      %512 = vmatpush1.msra.mxu0 0.0
      %513 = vmatprep.subr.mxu0 0.0
      %514 = vmatpush1.msra.mxu0 0.0
      %515 = vmatprep.subr.mxu0 0.0
      %516 = vmatpush1.msra.mxu0 0.0
      %517 = vmatprep.subr.mxu0 0.0
      %518 = vmatpush1.msra.mxu0 0.0
      %519 = vmatprep.subr.mxu0 0.0
      %520 = vmatpush1.msra.mxu0 0.0
      %521 = vmatprep.subr.mxu0 0.0
      %522 = vmatpush1.msra.mxu0 0.0
      %523 = vmatprep.subr.mxu0 0.0
      %524 = vmatpush1.msra.mxu0 0.0
      %525 = vmatprep.subr.mxu0 0.0
      %526 = vmatpush1.msra.mxu0 0.0
      %527 = vmatprep.subr.mxu0 0.0
      %528 = vmatpush1.msra.mxu0 0.0
      %529 = vmatprep.subr.mxu0 %v497
      %530 = vmatpush1.msra.mxu0 %v495
      %531 = vmatprep.subr.mxu0 0.0
      %532 = vmatpush2.msra.mxu0 0.0
      %533 = vmatprep.subr.mxu0 0.0
      %534 = vmatpush2.msra.mxu0 0.0
      %535 = vmatprep.subr.mxu0 0.0
      %536 = vmatpush2.msra.mxu0 0.0
      %537 = vmatprep.subr.mxu0 0.0
      %538 = vmatpush2.msra.mxu0 0.0
      %539 = vmatprep.subr.mxu0 0.0
      %540 = vmatpush2.msra.mxu0 0.0
      %541 = vmatprep.subr.mxu0 0.0
      %542 = vmatpush2.msra.mxu0 0.0
      %543 = vmatprep.subr.mxu0 0.0
      %544 = vmatpush2.msra.mxu0 0.0
      %545 = vmatprep.subr.mxu0 0.0
      %546 = vmatpush2.msra.mxu0 0.0
      %547 = vmatprep.subr.mxu0 0.0
      %548 = vmatpush2.msra.mxu0 0.0
      %549 = vmatprep.subr.mxu0 0.0
      %550 = vmatpush2.msra.mxu0 0.0
      %551 = vmatprep.subr.mxu0 0.0
      %552 = vmatpush2.msra.mxu0 0.0
      %553 = vmatprep.subr.mxu0 0.0
      %554 = vmatpush2.msra.mxu0 0.0
      %555 = vmatprep.subr.mxu0 0.0
      %556 = vmatpush2.msra.mxu0 0.0
      %557 = vmatprep.subr.mxu0 0.0
      %558 = vmatpush2.msra.mxu0 0.0
      %559 = vmatprep.subr.mxu0 0.0
      %560 = vmatpush2.msra.mxu0 0.0
      %561 = vmatprep.subr.mxu0 0.0
      %562 = vmatpush2.msra.mxu0 0.0
      %563 = vmatprep.mubr.f32.mxu0 0.0
      %564 = vmatmul.mubr.f32.gmra.mxu0 %v492
      %v565 = vpop.f32.mrf.mxu0
      %v566 = vadd.f32 %v484, %v565
      %v567 = vpop.f32.mrf.mxu0
      %v568 = vadd.f32 %v486, %v567
      %569 = vdwg.mxu0
      %v570 = vld [vmem:[%s4] sm:$0xff]
      %572 = vset.pattern.permute.xlu0 0
      %573 = vperm.xlu0 %572, %v570
      %v574 = vpop.permute.xlu0 %573
      %v576 = vmul.f32 %v566, %v574
      %v577 = vmul.f32 %v568, %v574
      %v578 = vld [vmem:[%s5] sm:$0xff]
      %580 = vset.pattern.permute.xlu0 0
      %581 = vperm.xlu0 %580, %v578
      %v582 = vpop.permute.xlu0 %581
      %v584 = vadd.f32 %v576, %v582
      %v585 = vadd.f32 %v577, %v582
      %v586 = vmax.f32 %v584, 0.0
      %v587 = vmax.f32 %v585, 0.0
      %v588 = vld [vmem:[#allocation2] sm:$0xff]
      %v589 = vadd.f32 %v586, %v587
      %590 = vadd.xlane.f32.xlu0 %v589
      %v591 = vpop.xlane.xlu0 %590
      %v592 = vadd.f32 %v588, %v591
      %vm593 = vcmask 7168
      %594 = vst.msk [vmem:[#allocation2] sm:$0xff] %vm593, %v592
      // Predicated region
      $region61: #{tpu_custom_call.1} parent=55 // pred_check
        %p595 = pneg %p395
      $region62: #{tpu_custom_call.1} parent=55 // pred_check_branch
        %597 = sbr.rel (%p595) target = $region64
      $region63: #{tpu_custom_call.1} parent=55 // pred_region
        %v598 = vld [vmem:[#allocation2] sm:$0xff]
        %v599 = vmul.f32 %v598, 0.00390625
        %v600 = vld [vmem:[%s6] sm:$0xff]
        %vm601 = vcmask 64512
        %v603 = vsel %vm601, %v600, 0
        %605 = vmatprep.subr.mxu0 0.0
        %606 = vmatpush1.msra.mxu0 0.0
        %607 = vmatprep.subr.mxu0 0.0
        %608 = vmatpush1.msra.mxu0 0.0
        %609 = vmatprep.subr.mxu0 0.0
        %610 = vmatpush1.msra.mxu0 0.0
        %611 = vmatprep.subr.mxu0 0.0
        %612 = vmatpush1.msra.mxu0 0.0
        %613 = vmatprep.subr.mxu0 0.0
        %614 = vmatpush1.msra.mxu0 0.0
        %615 = vmatprep.subr.mxu0 0.0
        %616 = vmatpush1.msra.mxu0 0.0
        %617 = vmatprep.subr.mxu0 0.0
        %618 = vmatpush1.msra.mxu0 0.0
        %619 = vmatprep.subr.mxu0 0.0
        %620 = vmatpush1.msra.mxu0 0.0
        %621 = vmatprep.subr.mxu0 0.0
        %622 = vmatpush1.msra.mxu0 0.0
        %623 = vmatprep.subr.mxu0 0.0
        %624 = vmatpush1.msra.mxu0 0.0
        %625 = vmatprep.subr.mxu0 0.0
        %626 = vmatpush1.msra.mxu0 0.0
        %627 = vmatprep.subr.mxu0 0.0
        %628 = vmatpush1.msra.mxu0 0.0
        %629 = vmatprep.subr.mxu0 0.0
        %630 = vmatpush1.msra.mxu0 0.0
        %631 = vmatprep.subr.mxu0 0.0
        %632 = vmatpush1.msra.mxu0 0.0
        %633 = vmatprep.subr.mxu0 0.0
        %634 = vmatpush1.msra.mxu0 0.0
        %635 = vmatprep.subr.mxu0 0.0
        %636 = vmatpush1.msra.mxu0 %v599
        %637 = vmatprep.subr.mxu0 0.0
        %638 = vmatpush2.msra.mxu0 0.0
        %639 = vmatprep.subr.mxu0 0.0
        %640 = vmatpush2.msra.mxu0 0.0
        %641 = vmatprep.subr.mxu0 0.0
        %642 = vmatpush2.msra.mxu0 0.0
        %643 = vmatprep.subr.mxu0 0.0
        %644 = vmatpush2.msra.mxu0 0.0
        %645 = vmatprep.subr.mxu0 0.0
        %646 = vmatpush2.msra.mxu0 0.0
        %647 = vmatprep.subr.mxu0 0.0
        %648 = vmatpush2.msra.mxu0 0.0
        %649 = vmatprep.subr.mxu0 0.0
        %650 = vmatpush2.msra.mxu0 0.0
        %651 = vmatprep.subr.mxu0 0.0
        %652 = vmatpush2.msra.mxu0 0.0
        %653 = vmatprep.subr.mxu0 0.0
        %654 = vmatpush2.msra.mxu0 0.0
        %655 = vmatprep.subr.mxu0 0.0
        %656 = vmatpush2.msra.mxu0 0.0
        %657 = vmatprep.subr.mxu0 0.0
        %658 = vmatpush2.msra.mxu0 0.0
        %659 = vmatprep.subr.mxu0 0.0
        %660 = vmatpush2.msra.mxu0 0.0
        %661 = vmatprep.subr.mxu0 0.0
        %662 = vmatpush2.msra.mxu0 0.0
        %663 = vmatprep.subr.mxu0 0.0
        %664 = vmatpush2.msra.mxu0 0.0
        %665 = vmatprep.subr.mxu0 0.0
        %666 = vmatpush2.msra.mxu0 0.0
        %667 = vmatprep.subr.mxu0 0.0
        %668 = vmatpush2.msra.mxu0 0.0
        %669 = vmatprep.mubr.f32.mxu0 0.0
        %670 = vmatmul.mubr.f32.gmra.mxu0 %v603
        %v671 = vpop.f32.mrf.mxu0
        %v672 = vadd.f32 0.0, %v671
        %v673 = vpop.f32.mrf.mxu0
        %674 = vdwg.mxu0
        %v675 = vld [vmem:[%s7] sm:$0xff]
        %v676 = vmul.f32 %v672, %v675
        %v677 = vld [vmem:[%s8] sm:$0xff]
        %v678 = vadd.f32 %v676, %v677
        %v679 = vxor.u32 %v678, 2147483648
        %v680 = vmul.f32 %v679, 1.442695
        %v681 = vpow.pop %v680
        %v682 = vadd.f32 %v681, 1.0
        %v683 = vrcp.pop %v682
        %v684 = vmul.f32 1.0, %v683
        %685 = vst.msk [vmem:[%s394] sm:$0xff] %vm593, %v684
      $region64: #{tpu_custom_call.1} parent=55 // pred_fallthru
        _
      %p686 = scmp.lt.s32.totalorder %s24, 1
      %s687 = scalar_select %p686, %s24, 1
      %s688 = smul.addr %s687, 8
      %s689 = scalar_lea.vmem %s9, %s688
      // Predicated region
      $region65: #{tpu_custom_call.1} parent=55 // pred_check
        %p690 = pneg %p253
      $region66: #{tpu_custom_call.1} parent=55 // pred_check_branch
        %692 = sbr.rel (%p690) target = $region68
      $region67: #{tpu_custom_call.1} parent=55 // pred_region
        _
      $region68: #{tpu_custom_call.1} parent=55 // pred_fallthru
        _
    $region56: #{tpu_custom_call.1} parent=5 // pred_fallthru
      _
    %p693 = scmp.le.s32.totalorder 2, %s15
    // Predicated region
    $region69: #{tpu_custom_call.1} parent=5 // pred_check
      %p694 = pneg %p693
    $region70: #{tpu_custom_call.1} parent=5 // pred_check_branch
      %696 = sbr.rel (%p694) target = $region72
    $region71: #{tpu_custom_call.1} parent=5 // pred_region
      %s697 = ssub.s32 %s15, 2
      // Predicated region
      $region73: #{tpu_custom_call.1} parent=71 // pred_check
        %p698 = pneg %p259
      $region74: #{tpu_custom_call.1} parent=71 // pred_check_branch
        %700 = sbr.rel (%p698) target = $region76
      $region75: #{tpu_custom_call.1} parent=71 // pred_region
        %p701 = scmp.lt.s32.totalorder %s26, 1
        %s702 = scalar_select %p701, %s26, 1
        %s703 = smul.addr %s702, 8
        %s704 = scalar_lea.vmem %s9, %s703
      $region76: #{tpu_custom_call.1} parent=71 // pred_fallthru
        _
    $region72: #{tpu_custom_call.1} parent=5 // pred_fallthru
      _
  $region6: #{tpu_custom_call.1} parent=0 // loop_footer
    %s19 = sadd.s32 1, %s15
  $region7: #{tpu_custom_call.1} parent=0 // loop_footer_branch
    %14 = sbr.rel target = $region3
  $region8: #{tpu_custom_call.1} parent=0 // loop_exit
    _

</llo_original>
